<compile_context>
chip_gen: v7x
topology: tpu7x:2x2x1
jax: 0.10.0
libtpu: 0.0.40
codegen_flags: <defaults>
</compile_context>

<pallas_src>
import jax
import jax.numpy as jnp
from jax.experimental import pallas as pl
from jax.experimental.pallas import tpu as pltpu

D_IN = 134
D_OUT = 2
FC_HIDDEN = [D_IN, 150, 150, 100, D_OUT]
BN_EPS = 1e-5

# Per-edge lane-aligned padded feature widths for FC_HIDDEN = [134,150,150,100,2].
PADDED = (256, 256, 256, 128, 128)


def _round_up(a, m):
    return (a + m - 1) // m * m


# ---------------------------------------------------------------------------
# Chip-aware budgets (guarded: falls back to the conservative v7x settings).
# ---------------------------------------------------------------------------

def _vmem_capacity_bytes():
    try:
        info = pltpu.get_tpu_info()
        return int(getattr(info, "vmem_capacity_bytes", 64 * 1024 * 1024))
    except Exception:
        return 64 * 1024 * 1024


_VMEM_CAP = _vmem_capacity_bytes()
if _VMEM_CAP >= 96 * 1024 * 1024:            # v5e / v6e: 128 MiB physical VMEM
    VMEM_LIMIT = 64 * 1024 * 1024
    _BT_CANDIDATES = (512, 1024, 2048)
else:                                         # v7x (64 MiB physical) or unknown
    VMEM_LIMIT = 32 * 1024 * 1024
    _BT_CANDIDATES = (256, 512, 1024)

# Whole-network-resident (single pallas_call) path threshold, in padded rows.
FUSED_MAX_ROWS = 4096 if VMEM_LIMIT >= 64 * 1024 * 1024 else 2048


def _pick_batch_tile(B):
    """Pick the batch tile that minimizes dead batch padding (ties -> larger)."""
    best = None
    for bt in _BT_CANDIDATES:
        pad = _round_up(B, bt) - B
        if best is None or pad < best[0] or (pad == best[0] and bt > best[1]):
            best = (pad, bt)
    return best[1]


# ---------------------------------------------------------------------------
# Kernels
# ---------------------------------------------------------------------------

def _stats_kernel(x_ref, stats_ref):
    """Per-tile partial (sum, sum-of-squares) of the network input.

    Batch-padding rows of x are exactly zero, so no masking is needed here.
    """
    h = x_ref[...]
    s = jnp.sum(h, axis=0, keepdims=True)
    sq = jnp.sum(h * h, axis=0, keepdims=True)
    stats_ref[...] = jnp.concatenate([s, sq], axis=0)      # (2, P)


def _make_layer_kernel(*, bn_relu, do_stats, do_softmax, batch_tile,
                       n_valid, mask_rows, p_out):
    """One MLP layer: (BN-affine -> ReLU)? -> Linear (+bias) (+softmax)
    (+ per-tile partial stats of the produced activation)."""

    def kernel(h_ref, c_ref, w_ref, o_ref, *maybe_stats):
        c = c_ref[...]                      # [8, P_in] f32: row0=scale row1=shift row2=bias
        h = h_ref[...].astype(jnp.float32)  # [BT, P_in]  (bf16 inter-layer activations)
        if bn_relu:
            h = jnp.maximum(h * c[0:1, :] + c[1:2, :], 0.0)
        # bf16 operands on the MXU, f32 accumulation; bias add in f32.
        y = jnp.dot(h.astype(jnp.bfloat16), w_ref[...],
                    preferred_element_type=jnp.float32) + c[2:3, :p_out]
        if do_softmax:
            # Only the first D_OUT lanes are real classes; store stays lane-dense.
            col = jax.lax.broadcasted_iota(jnp.int32, y.shape, 1)
            valid = col < D_OUT
            m = jnp.max(jnp.where(valid, y, -jnp.inf), axis=-1, keepdims=True)
            e = jnp.where(valid, jnp.exp(y - m), 0.0)
            y = e * pl.reciprocal(jnp.sum(e, axis=-1, keepdims=True), approx=True)
        o_ref[...] = y.astype(o_ref.dtype)

        if do_stats:
            stats_ref = maybe_stats[0]      # view (2, P_out) — one partial per tile

            def _store(v):
                s = jnp.sum(v, axis=0, keepdims=True)
                sq = jnp.sum(v * v, axis=0, keepdims=True)
                stats_ref[...] = jnp.concatenate([s, sq], axis=0)

            if mask_rows:
                # Batch-padding rows only exist in the LAST tile; mask only there.
                t = pl.program_id(0)
                last = t == pl.num_programs(0) - 1

                @pl.when(last)
                def _():
                    row = (jax.lax.broadcasted_iota(jnp.int32, y.shape, 0)
                           + t * batch_tile)
                    _store(jnp.where(row < n_valid, y, 0.0))

                @pl.when(jnp.logical_not(last))
                def _():
                    _store(y)
            else:
                _store(y)

    return kernel


def _make_fused_kernel(*, n_valid, b_pad):
    """Whole network in one kernel: everything resident in VMEM, BN stats
    computed in-kernel between layers, x read once, softmax written once."""
    mask_rows = b_pad != n_valid
    inv_n = 1.0 / float(n_valid)

    def kernel(x_ref, c0, w0, c1, w1, c2, w2, c3, w3, o_ref):
        consts = (c0, c1, c2, c3)
        weights = (w0, w1, w2, w3)
        if mask_rows:
            row = jax.lax.broadcasted_iota(jnp.int32, (b_pad, 1), 0)
            row_ok = row < n_valid

        h = x_ref[...]                                      # [Bp, 256] f32, pad rows zero
        for i in range(4):
            c = consts[i][...]                              # [8, P_in]
            p_out = PADDED[i + 1]
            gamma, beta, bias = c[0:1, :], c[1:2, :], c[2:3, :p_out]
            # Training-mode BN batch stats (E[h^2]-mean^2; f32 throughout).
            mean = jnp.sum(h, axis=0, keepdims=True) * inv_n
            var = jnp.maximum(
                jnp.sum(h * h, axis=0, keepdims=True) * inv_n - mean * mean, 0.0)
            scale = jax.lax.rsqrt(var + BN_EPS) * gamma
            shift = beta - mean * scale
            h = h * scale + shift
            if i != 0:
                h = jnp.maximum(h, 0.0)
            h = jnp.dot(h.astype(jnp.bfloat16), weights[i][...],
                        preferred_element_type=jnp.float32) + bias
            if mask_rows and i < 3:
                # Keep padded rows at zero so the next layer's stats are exact.
                h = jnp.where(row_ok, h, 0.0)

        col = jax.lax.broadcasted_iota(jnp.int32, h.shape, 1)
        valid = col < D_OUT
        m = jnp.max(jnp.where(valid, h, -jnp.inf), axis=-1, keepdims=True)
        e = jnp.where(valid, jnp.exp(h - m), 0.0)
        o_ref[...] = e * pl.reciprocal(jnp.sum(e, axis=-1, keepdims=True), approx=True)

    return kernel


# ---------------------------------------------------------------------------
# pallas_call wrappers
# ---------------------------------------------------------------------------

def _stats_call(x_p, *, batch_tile):
    b_pad, p = x_p.shape
    nbt = b_pad // batch_tile
    return pl.pallas_call(
        _stats_kernel,
        out_shape=jax.ShapeDtypeStruct((nbt, 2, p), jnp.float32),
        grid=(nbt,),
        in_specs=[pl.BlockSpec((batch_tile, p), lambda t: (t, 0))],
        out_specs=pl.BlockSpec((None, 2, p), lambda t: (t, 0, 0)),
        compiler_params=pltpu.CompilerParams(
            dimension_semantics=("parallel",), vmem_limit_bytes=VMEM_LIMIT),
    )(x_p)


def _layer_call(h, consts, w_bf16, *, bn_relu, do_stats, do_softmax,
                batch_tile, n_valid, act_dtype):
    b_pad, p_in = h.shape
    p_out = w_bf16.shape[1]
    nbt = b_pad // batch_tile
    mask_rows = do_stats and (b_pad != n_valid)
    kernel = _make_layer_kernel(bn_relu=bn_relu, do_stats=do_stats,
                                do_softmax=do_softmax, batch_tile=batch_tile,
                                n_valid=n_valid, mask_rows=mask_rows, p_out=p_out)
    in_specs = [pl.BlockSpec((batch_tile, p_in), lambda t: (t, 0)),
                pl.BlockSpec((8, p_in), lambda t: (0, 0)),
                pl.BlockSpec((p_in, p_out), lambda t: (0, 0))]
    act_spec = pl.BlockSpec((batch_tile, p_out), lambda t: (t, 0))
    if do_stats:
        out_shape = (jax.ShapeDtypeStruct((b_pad, p_out), act_dtype),
                     jax.ShapeDtypeStruct((nbt, 2, p_out), jnp.float32))
        out_specs = [act_spec,
                     pl.BlockSpec((None, 2, p_out), lambda t: (t, 0, 0))]
    else:
        out_shape = jax.ShapeDtypeStruct((b_pad, p_out), act_dtype)
        out_specs = act_spec
    # Per-tile partial stats => no batch-resident accumulator => every axis is
    # "parallel" (lets v7x's 2 TensorCores shard the stats-fused layers too).
    return pl.pallas_call(
        kernel,
        out_shape=out_shape,
        grid=(nbt,),
        in_specs=in_specs,
        out_specs=out_specs,
        compiler_params=pltpu.CompilerParams(
            dimension_semantics=("parallel",), vmem_limit_bytes=VMEM_LIMIT),
    )(h, consts, w_bf16)


def _fused_call(x_p, consts, weights, *, n_valid):
    b_pad = x_p.shape[0]
    kernel = _make_fused_kernel(n_valid=n_valid, b_pad=b_pad)
    in_specs = [pl.BlockSpec(x_p.shape, lambda i: (0, 0))]
    args = [x_p]
    for c, w in zip(consts, weights):
        in_specs.append(pl.BlockSpec(c.shape, lambda i: (0, 0)))
        in_specs.append(pl.BlockSpec(w.shape, lambda i: (0, 0)))
        args.append(c)
        args.append(w)
    return pl.pallas_call(
        kernel,
        out_shape=jax.ShapeDtypeStruct((b_pad, PADDED[-1]), jnp.float32),
        grid=(1,),
        in_specs=in_specs,
        out_specs=pl.BlockSpec((b_pad, PADDED[-1]), lambda i: (0, 0)),
        compiler_params=pltpu.CompilerParams(
            dimension_semantics=("arbitrary",), vmem_limit_bytes=VMEM_LIMIT),
    )(*args)


# ---------------------------------------------------------------------------
# Host-side packing / glue
# ---------------------------------------------------------------------------

def prepare_params(params):
    """Zero-pad all parameters once to per-edge lane/sublane-aligned shapes."""
    prepped = []
    for i, (g, be, w, b) in enumerate(params):
        p_in, p_out = PADDED[i], PADDED[i + 1]
        d_in, d_out = w.shape
        g_p = jnp.zeros((p_in,), jnp.float32).at[:d_in].set(g)
        be_p = jnp.zeros((p_in,), jnp.float32).at[:d_in].set(be)
        w_p = jnp.zeros((p_in, p_out), jnp.float32).at[:d_in, :d_out].set(w)
        b_p = jnp.zeros((p_in,), jnp.float32).at[:d_out].set(b)
        prepped.append((g_p, be_p, w_p, w_p.astype(jnp.bfloat16), b_p))
    return prepped


def _pack_consts(r0, r1, bias):
    """Pack per-layer vectors into one [8, P_in] slab (one small DMA per call)."""
    p = r0.shape[0]
    return (jnp.zeros((8, p), jnp.float32)
            .at[0].set(r0).at[1].set(r1).at[2].set(bias))


def _bn_affine(stats_partials, gamma_p, beta_p, n):
    """Reduce per-tile (sum, sumsq) partials -> BN as a per-feature affine.

    Note: var = E[h^2] - mean^2 in f32; fine for BN-scale activations (inputs
    are re-centered every layer), revisit if features have |mean| >> std.
    """
    tot = jnp.sum(stats_partials, axis=0)        # (2, P)
    mean = tot[0] / n
    var = jnp.maximum(tot[1] / n - mean * mean, 0.0)
    scale = jax.lax.rsqrt(var + BN_EPS) * gamma_p
    shift = beta_p - mean * scale
    return scale, shift


@jax.jit
def _fused_forward(x, prepped):
    """Single-kernel path: whole (padded) batch + network resident in VMEM."""
    B = x.shape[0]
    B_pad = _round_up(B, 8)
    x_p = jnp.pad(x.astype(jnp.float32), ((0, B_pad - B), (0, PADDED[0] - D_IN)))
    consts = [_pack_consts(g, be, b) for (g, be, _, _, b) in prepped]
    weights = [w_bf for (_, _, _, w_bf, _) in prepped]
    out_p = _fused_call(x_p, consts, weights, n_valid=B)
    return out_p[:B, :D_OUT]


@jax.jit
def _tiled_forward(x, prepped):
    """Batch-gridded path: per-layer calls, bf16 inter-layer activations,
    fused per-tile BN partial stats, host-side stats reduction."""
    B = x.shape[0]
    BT = _pick_batch_tile(B)
    B_pad = _round_up(B, BT)
    x_p = jnp.pad(x.astype(jnp.float32), ((0, B_pad - B), (0, PADDED[0] - D_IN)))

    # Pass 0: per-tile batch statistics of the network input (parallel).
    stats = _stats_call(x_p, batch_tile=BT)

    # Layer 0: no ReLU between BN and Linear -> fold the BN affine into W0/b0.
    g0, be0, w0_f32, _, b0 = prepped[0]
    scale0, shift0 = _bn_affine(stats, g0, be0, B)
    w0_eff = (scale0[:, None] * w0_f32).astype(jnp.bfloat16)
    b0_eff = shift0 @ w0_f32 + b0
    zeros0 = jnp.zeros((PADDED[0],), jnp.float32)
    h, stats = _layer_call(x_p, _pack_consts(zeros0, zeros0, b0_eff), w0_eff,
                           bn_relu=False, do_stats=True, do_softmax=False,
                           batch_tile=BT, n_valid=B, act_dtype=jnp.bfloat16)

    # Layers 1, 2: BN -> ReLU -> Linear, fused with next-layer partial stats.
    for i in (1, 2):
        g, be, _, w_bf, b = prepped[i]
        scale, shift = _bn_affine(stats, g, be, B)
        h, stats = _layer_call(h, _pack_consts(scale, shift, b), w_bf,
                               bn_relu=True, do_stats=True, do_softmax=False,
                               batch_tile=BT, n_valid=B, act_dtype=jnp.bfloat16)

    # Layer 3: BN -> ReLU -> Linear -> softmax; lane-dense [B_pad, 128] f32 store.
    g, be, _, w_bf, b = prepped[3]
    scale, shift = _bn_affine(stats, g, be, B)
    out_p = _layer_call(h, _pack_consts(scale, shift, b), w_bf,
                        bn_relu=True, do_stats=False, do_softmax=True,
                        batch_tile=BT, n_valid=B, act_dtype=jnp.float32)
    return out_p[:B, :D_OUT]


def simple_net_forward(x, prepped):
    """x: [B, D_IN] float32; prepped: output of prepare_params()."""
    if _round_up(x.shape[0], 8) <= FUSED_MAX_ROWS:
        return _fused_forward(x, prepped)
    return _tiled_forward(x, prepped)


# ---------------------------------------------------------------------------
# Init + pure-JAX reference + self-test
# ---------------------------------------------------------------------------

def init_params(key):
    """PyTorch-style (uniform +-1/sqrt(fan_in)) init; W stored as [d_in, d_out]."""
    params = []
    for i in range(len(FC_HIDDEN) - 1):
        d_in, d_out = FC_HIDDEN[i], FC_HIDDEN[i + 1]
        key, kw, kb = jax.random.split(key, 3)
        bound = 1.0 / (d_in ** 0.5)
        w = jax.random.uniform(kw, (d_in, d_out), jnp.float32, -bound, bound)
        b = jax.random.uniform(kb, (d_out,), jnp.float32, -bound, bound)
        gamma = jnp.ones((d_in,), jnp.float32)
        beta = jnp.zeros((d_in,), jnp.float32)
        params.append((gamma, beta, w, b))
    return params


def reference_forward(x, params):
    """Pure-JAX f32 reference (PyTorch training-mode BN semantics)."""
    h = x
    for i, (g, be, w, b) in enumerate(params):
        mean = jnp.mean(h, axis=0, keepdims=True)
        var = jnp.mean((h - mean) ** 2, axis=0, keepdims=True)
        h = (h - mean) * jax.lax.rsqrt(var + BN_EPS) * g + be
        if i != 0:
            h = jnp.maximum(h, 0.0)
        h = h @ w + b
    return jax.nn.softmax(h, axis=-1)


if __name__ == "__main__":
    key = jax.random.PRNGKey(0)
    key, kx1, kx2 = jax.random.split(key, 3)
    params = init_params(key)
    prepped = prepare_params(params)

    # --- Small batch: fully-fused single-pallas_call path -------------------
    B1 = 8
    x1 = jax.random.normal(kx1, (B1, D_IN), jnp.float32)
    out1 = jax.block_until_ready(simple_net_forward(x1, prepped))
    ref1 = reference_forward(x1, params)
    assert out1.shape == (B1, D_OUT)
    assert jnp.allclose(out1, ref1, atol=2e-2, rtol=2e-2), "fused path mismatch"
    assert jnp.allclose(jnp.sum(out1, axis=-1), 1.0, atol=1e-2), "softmax rows must sum to ~1"

    # --- Moderate batch: tiled path (bf16 activations, per-tile BN partials) -
    B2 = 600
    x2 = jax.random.normal(kx2, (B2, D_IN), jnp.float32)
    out2 = jax.block_until_ready(_tiled_forward(x2, prepped))
    ref2 = reference_forward(x2, params)
    assert out2.shape == (B2, D_OUT)
    # bf16 MXU operands + bf16 inter-layer stores + approx reciprocal -> loose compare.
    assert jnp.allclose(out2, ref2, atol=4e-2, rtol=4e-2), "tiled path mismatch"
    assert jnp.allclose(jnp.sum(out2, axis=-1), 1.0, atol=1e-2), "softmax rows must sum to ~1"

    print("KERNEL_OK")
</pallas_src>

<mosaic_0001>
module attributes {stable_mosaic.version = 11 : i64} {
  func.func @kernel(%arg0: i32, %arg1: memref<8x256xf32, #tpu.memory_space<vmem>>, %arg2: memref<8x256xf32, #tpu.memory_space<vmem>>, %arg3: memref<256x256xbf16, #tpu.memory_space<vmem>>, %arg4: memref<8x256xf32, #tpu.memory_space<vmem>>, %arg5: memref<256x256xbf16, #tpu.memory_space<vmem>>, %arg6: memref<8x256xf32, #tpu.memory_space<vmem>>, %arg7: memref<256x128xbf16, #tpu.memory_space<vmem>>, %arg8: memref<8x128xf32, #tpu.memory_space<vmem>>, %arg9: memref<128x128xbf16, #tpu.memory_space<vmem>>, %arg10: memref<8x128xf32, #tpu.memory_space<vmem>>) attributes {dimension_semantics = [#tpu.dimension_semantics<arbitrary>], iteration_bounds = array<i64: 1>, scalar_prefetch = 0 : i64, scratch_operands = 0 : i64, tpu.core_type = #tpu.core_type<tc>, window_params = [{pipeline_mode = #tpu.pipeline_mode<synchronous>, transform_indices = @transform_0, window_bounds = array<i64: 8, 256>}, {pipeline_mode = #tpu.pipeline_mode<synchronous>, transform_indices = @transform_1, window_bounds = array<i64: 8, 256>}, {pipeline_mode = #tpu.pipeline_mode<synchronous>, transform_indices = @transform_2, window_bounds = array<i64: 256, 256>}, {pipeline_mode = #tpu.pipeline_mode<synchronous>, transform_indices = @transform_3, window_bounds = array<i64: 8, 256>}, {pipeline_mode = #tpu.pipeline_mode<synchronous>, transform_indices = @transform_4, window_bounds = array<i64: 256, 256>}, {pipeline_mode = #tpu.pipeline_mode<synchronous>, transform_indices = @transform_5, window_bounds = array<i64: 8, 256>}, {pipeline_mode = #tpu.pipeline_mode<synchronous>, transform_indices = @transform_6, window_bounds = array<i64: 256, 128>}, {pipeline_mode = #tpu.pipeline_mode<synchronous>, transform_indices = @transform_7, window_bounds = array<i64: 8, 128>}, {pipeline_mode = #tpu.pipeline_mode<synchronous>, transform_indices = @transform_8, window_bounds = array<i64: 128, 128>}, {pipeline_mode = #tpu.pipeline_mode<synchronous>, transform_indices = @transform_9, window_bounds = array<i64: 8, 128>}]} {
    %c0 = arith.constant 0 : index
    %c0_0 = arith.constant 0 : index
    %0 = vector.load %arg1[%c0, %c0_0] : memref<8x256xf32, #tpu.memory_space<vmem>>, vector<8x256xf32>
    %c0_1 = arith.constant 0 : index
    %c0_2 = arith.constant 0 : index
    %1 = vector.load %arg2[%c0_1, %c0_2] : memref<8x256xf32, #tpu.memory_space<vmem>>, vector<8x256xf32>
    %2 = vector.extract_strided_slice %1 {offsets = [0, 0], sizes = [1, 256], strides = [1, 1]} : vector<8x256xf32> to vector<1x256xf32>
    %3 = vector.extract_strided_slice %1 {offsets = [1, 0], sizes = [1, 256], strides = [1, 1]} : vector<8x256xf32> to vector<1x256xf32>
    %4 = vector.extract_strided_slice %1 {offsets = [2, 0], sizes = [1, 256], strides = [1, 1]} : vector<8x256xf32> to vector<1x256xf32>
    %cst = arith.constant dense<0.000000e+00> : vector<256xf32>
    %5 = vector.multi_reduction <add>, %0, %cst [0] : vector<8x256xf32> to vector<256xf32>
    %6 = vector.shape_cast %5 : vector<256xf32> to vector<1x256xf32>
    %cst_3 = arith.constant 1.250000e-01 : f32
    %7 = vector.broadcast %cst_3 : f32 to vector<1x256xf32>
    %8 = arith.mulf %6, %7 : vector<1x256xf32>
    %9 = arith.mulf %0, %0 : vector<8x256xf32>
    %cst_4 = arith.constant dense<0.000000e+00> : vector<256xf32>
    %10 = vector.multi_reduction <add>, %9, %cst_4 [0] : vector<8x256xf32> to vector<256xf32>
    %11 = vector.shape_cast %10 : vector<256xf32> to vector<1x256xf32>
    %cst_5 = arith.constant 1.250000e-01 : f32
    %12 = vector.broadcast %cst_5 : f32 to vector<1x256xf32>
    %13 = arith.mulf %11, %12 : vector<1x256xf32>
    %14 = arith.mulf %8, %8 : vector<1x256xf32>
    %15 = arith.subf %13, %14 : vector<1x256xf32>
    %cst_6 = arith.constant 0.000000e+00 : f32
    %16 = vector.broadcast %cst_6 : f32 to vector<1x256xf32>
    %17 = arith.maximumf %15, %16 : vector<1x256xf32>
    %cst_7 = arith.constant 9.99999974E-6 : f32
    %18 = vector.broadcast %cst_7 : f32 to vector<1x256xf32>
    %19 = arith.addf %17, %18 : vector<1x256xf32>
    %20 = math.rsqrt %19 : vector<1x256xf32>
    %21 = arith.mulf %20, %2 : vector<1x256xf32>
    %22 = arith.mulf %8, %21 : vector<1x256xf32>
    %23 = arith.subf %3, %22 : vector<1x256xf32>
    %24 = vector.broadcast %21 : vector<1x256xf32> to vector<8x256xf32>
    %25 = arith.mulf %0, %24 : vector<8x256xf32>
    %26 = vector.broadcast %23 : vector<1x256xf32> to vector<8x256xf32>
    %27 = arith.addf %25, %26 : vector<8x256xf32>
    %28 = arith.truncf %27 : vector<8x256xf32> to vector<8x256xbf16>
    %c0_8 = arith.constant 0 : index
    %c0_9 = arith.constant 0 : index
    %29 = vector.load %arg3[%c0_8, %c0_9] : memref<256x256xbf16, #tpu.memory_space<vmem>>, vector<256x256xbf16>
    %cst_10 = arith.constant dense<0.000000e+00> : vector<8x256xf32>
    %30 = tpu.matmul %28, %29, %cst_10 {dimension_numbers = #tpu.dot_dimension_numbers<[1], [0], [0], [1], [0, 0, 1, 1], [], []>} : vector<8x256xbf16>, vector<256x256xbf16>, vector<8x256xf32> -> vector<8x256xf32>
    %31 = vector.broadcast %4 : vector<1x256xf32> to vector<8x256xf32>
    %32 = arith.addf %30, %31 : vector<8x256xf32>
    %c0_11 = arith.constant 0 : index
    %c0_12 = arith.constant 0 : index
    %33 = vector.load %arg4[%c0_11, %c0_12] : memref<8x256xf32, #tpu.memory_space<vmem>>, vector<8x256xf32>
    %34 = vector.extract_strided_slice %33 {offsets = [0, 0], sizes = [1, 256], strides = [1, 1]} : vector<8x256xf32> to vector<1x256xf32>
    %35 = vector.extract_strided_slice %33 {offsets = [1, 0], sizes = [1, 256], strides = [1, 1]} : vector<8x256xf32> to vector<1x256xf32>
    %36 = vector.extract_strided_slice %33 {offsets = [2, 0], sizes = [1, 256], strides = [1, 1]} : vector<8x256xf32> to vector<1x256xf32>
    %cst_13 = arith.constant dense<0.000000e+00> : vector<256xf32>
    %37 = vector.multi_reduction <add>, %32, %cst_13 [0] : vector<8x256xf32> to vector<256xf32>
    %38 = vector.shape_cast %37 : vector<256xf32> to vector<1x256xf32>
    %cst_14 = arith.constant 1.250000e-01 : f32
    %39 = vector.broadcast %cst_14 : f32 to vector<1x256xf32>
    %40 = arith.mulf %38, %39 : vector<1x256xf32>
    %41 = arith.mulf %32, %32 : vector<8x256xf32>
    %cst_15 = arith.constant dense<0.000000e+00> : vector<256xf32>
    %42 = vector.multi_reduction <add>, %41, %cst_15 [0] : vector<8x256xf32> to vector<256xf32>
    %43 = vector.shape_cast %42 : vector<256xf32> to vector<1x256xf32>
    %cst_16 = arith.constant 1.250000e-01 : f32
    %44 = vector.broadcast %cst_16 : f32 to vector<1x256xf32>
    %45 = arith.mulf %43, %44 : vector<1x256xf32>
    %46 = arith.mulf %40, %40 : vector<1x256xf32>
    %47 = arith.subf %45, %46 : vector<1x256xf32>
    %cst_17 = arith.constant 0.000000e+00 : f32
    %48 = vector.broadcast %cst_17 : f32 to vector<1x256xf32>
    %49 = arith.maximumf %47, %48 : vector<1x256xf32>
    %cst_18 = arith.constant 9.99999974E-6 : f32
    %50 = vector.broadcast %cst_18 : f32 to vector<1x256xf32>
    %51 = arith.addf %49, %50 : vector<1x256xf32>
    %52 = math.rsqrt %51 : vector<1x256xf32>
    %53 = arith.mulf %52, %34 : vector<1x256xf32>
    %54 = arith.mulf %40, %53 : vector<1x256xf32>
    %55 = arith.subf %35, %54 : vector<1x256xf32>
    %56 = vector.broadcast %53 : vector<1x256xf32> to vector<8x256xf32>
    %57 = arith.mulf %32, %56 : vector<8x256xf32>
    %58 = vector.broadcast %55 : vector<1x256xf32> to vector<8x256xf32>
    %59 = arith.addf %57, %58 : vector<8x256xf32>
    %cst_19 = arith.constant 0.000000e+00 : f32
    %60 = vector.broadcast %cst_19 : f32 to vector<8x256xf32>
    %61 = arith.maximumf %59, %60 : vector<8x256xf32>
    %62 = arith.truncf %61 : vector<8x256xf32> to vector<8x256xbf16>
    %c0_20 = arith.constant 0 : index
    %c0_21 = arith.constant 0 : index
    %63 = vector.load %arg5[%c0_20, %c0_21] : memref<256x256xbf16, #tpu.memory_space<vmem>>, vector<256x256xbf16>
    %cst_22 = arith.constant dense<0.000000e+00> : vector<8x256xf32>
    %64 = tpu.matmul %62, %63, %cst_22 {dimension_numbers = #tpu.dot_dimension_numbers<[1], [0], [0], [1], [0, 0, 1, 1], [], []>} : vector<8x256xbf16>, vector<256x256xbf16>, vector<8x256xf32> -> vector<8x256xf32>
    %65 = vector.broadcast %36 : vector<1x256xf32> to vector<8x256xf32>
    %66 = arith.addf %64, %65 : vector<8x256xf32>
    %c0_23 = arith.constant 0 : index
    %c0_24 = arith.constant 0 : index
    %67 = vector.load %arg6[%c0_23, %c0_24] : memref<8x256xf32, #tpu.memory_space<vmem>>, vector<8x256xf32>
    %68 = vector.extract_strided_slice %67 {offsets = [0, 0], sizes = [1, 256], strides = [1, 1]} : vector<8x256xf32> to vector<1x256xf32>
    %69 = vector.extract_strided_slice %67 {offsets = [1, 0], sizes = [1, 256], strides = [1, 1]} : vector<8x256xf32> to vector<1x256xf32>
    %70 = vector.extract_strided_slice %67 {offsets = [2, 0], sizes = [1, 128], strides = [1, 1]} : vector<8x256xf32> to vector<1x128xf32>
    %cst_25 = arith.constant dense<0.000000e+00> : vector<256xf32>
    %71 = vector.multi_reduction <add>, %66, %cst_25 [0] : vector<8x256xf32> to vector<256xf32>
    %72 = vector.shape_cast %71 : vector<256xf32> to vector<1x256xf32>
    %cst_26 = arith.constant 1.250000e-01 : f32
    %73 = vector.broadcast %cst_26 : f32 to vector<1x256xf32>
    %74 = arith.mulf %72, %73 : vector<1x256xf32>
    %75 = arith.mulf %66, %66 : vector<8x256xf32>
    %cst_27 = arith.constant dense<0.000000e+00> : vector<256xf32>
    %76 = vector.multi_reduction <add>, %75, %cst_27 [0] : vector<8x256xf32> to vector<256xf32>
    %77 = vector.shape_cast %76 : vector<256xf32> to vector<1x256xf32>
    %cst_28 = arith.constant 1.250000e-01 : f32
    %78 = vector.broadcast %cst_28 : f32 to vector<1x256xf32>
    %79 = arith.mulf %77, %78 : vector<1x256xf32>
    %80 = arith.mulf %74, %74 : vector<1x256xf32>
    %81 = arith.subf %79, %80 : vector<1x256xf32>
    %cst_29 = arith.constant 0.000000e+00 : f32
    %82 = vector.broadcast %cst_29 : f32 to vector<1x256xf32>
    %83 = arith.maximumf %81, %82 : vector<1x256xf32>
    %cst_30 = arith.constant 9.99999974E-6 : f32
    %84 = vector.broadcast %cst_30 : f32 to vector<1x256xf32>
    %85 = arith.addf %83, %84 : vector<1x256xf32>
    %86 = math.rsqrt %85 : vector<1x256xf32>
    %87 = arith.mulf %86, %68 : vector<1x256xf32>
    %88 = arith.mulf %74, %87 : vector<1x256xf32>
    %89 = arith.subf %69, %88 : vector<1x256xf32>
    %90 = vector.broadcast %87 : vector<1x256xf32> to vector<8x256xf32>
    %91 = arith.mulf %66, %90 : vector<8x256xf32>
    %92 = vector.broadcast %89 : vector<1x256xf32> to vector<8x256xf32>
    %93 = arith.addf %91, %92 : vector<8x256xf32>
    %cst_31 = arith.constant 0.000000e+00 : f32
    %94 = vector.broadcast %cst_31 : f32 to vector<8x256xf32>
    %95 = arith.maximumf %93, %94 : vector<8x256xf32>
    %96 = arith.truncf %95 : vector<8x256xf32> to vector<8x256xbf16>
    %c0_32 = arith.constant 0 : index
    %c0_33 = arith.constant 0 : index
    %97 = vector.load %arg7[%c0_32, %c0_33] : memref<256x128xbf16, #tpu.memory_space<vmem>>, vector<256x128xbf16>
    %cst_34 = arith.constant dense<0.000000e+00> : vector<8x128xf32>
    %98 = tpu.matmul %96, %97, %cst_34 {dimension_numbers = #tpu.dot_dimension_numbers<[1], [0], [0], [1], [0, 0, 1, 1], [], []>} : vector<8x256xbf16>, vector<256x128xbf16>, vector<8x128xf32> -> vector<8x128xf32>
    %99 = vector.broadcast %70 : vector<1x128xf32> to vector<8x128xf32>
    %100 = arith.addf %98, %99 : vector<8x128xf32>
    %c0_35 = arith.constant 0 : index
    %c0_36 = arith.constant 0 : index
    %101 = vector.load %arg8[%c0_35, %c0_36] : memref<8x128xf32, #tpu.memory_space<vmem>>, vector<8x128xf32>
    %102 = vector.extract_strided_slice %101 {offsets = [0, 0], sizes = [1, 128], strides = [1, 1]} : vector<8x128xf32> to vector<1x128xf32>
    %103 = vector.extract_strided_slice %101 {offsets = [1, 0], sizes = [1, 128], strides = [1, 1]} : vector<8x128xf32> to vector<1x128xf32>
    %104 = vector.extract_strided_slice %101 {offsets = [2, 0], sizes = [1, 128], strides = [1, 1]} : vector<8x128xf32> to vector<1x128xf32>
    %cst_37 = arith.constant dense<0.000000e+00> : vector<128xf32>
    %105 = vector.multi_reduction <add>, %100, %cst_37 [0] : vector<8x128xf32> to vector<128xf32>
    %106 = vector.shape_cast %105 : vector<128xf32> to vector<1x128xf32>
    %cst_38 = arith.constant 1.250000e-01 : f32
    %107 = vector.broadcast %cst_38 : f32 to vector<1x128xf32>
    %108 = arith.mulf %106, %107 : vector<1x128xf32>
    %109 = arith.mulf %100, %100 : vector<8x128xf32>
    %cst_39 = arith.constant dense<0.000000e+00> : vector<128xf32>
    %110 = vector.multi_reduction <add>, %109, %cst_39 [0] : vector<8x128xf32> to vector<128xf32>
    %111 = vector.shape_cast %110 : vector<128xf32> to vector<1x128xf32>
    %cst_40 = arith.constant 1.250000e-01 : f32
    %112 = vector.broadcast %cst_40 : f32 to vector<1x128xf32>
    %113 = arith.mulf %111, %112 : vector<1x128xf32>
    %114 = arith.mulf %108, %108 : vector<1x128xf32>
    %115 = arith.subf %113, %114 : vector<1x128xf32>
    %cst_41 = arith.constant 0.000000e+00 : f32
    %116 = vector.broadcast %cst_41 : f32 to vector<1x128xf32>
    %117 = arith.maximumf %115, %116 : vector<1x128xf32>
    %cst_42 = arith.constant 9.99999974E-6 : f32
    %118 = vector.broadcast %cst_42 : f32 to vector<1x128xf32>
    %119 = arith.addf %117, %118 : vector<1x128xf32>
    %120 = math.rsqrt %119 : vector<1x128xf32>
    %121 = arith.mulf %120, %102 : vector<1x128xf32>
    %122 = arith.mulf %108, %121 : vector<1x128xf32>
    %123 = arith.subf %103, %122 : vector<1x128xf32>
    %124 = vector.broadcast %121 : vector<1x128xf32> to vector<8x128xf32>
    %125 = arith.mulf %100, %124 : vector<8x128xf32>
    %126 = vector.broadcast %123 : vector<1x128xf32> to vector<8x128xf32>
    %127 = arith.addf %125, %126 : vector<8x128xf32>
    %cst_43 = arith.constant 0.000000e+00 : f32
    %128 = vector.broadcast %cst_43 : f32 to vector<8x128xf32>
    %129 = arith.maximumf %127, %128 : vector<8x128xf32>
    %130 = arith.truncf %129 : vector<8x128xf32> to vector<8x128xbf16>
    %c0_44 = arith.constant 0 : index
    %c0_45 = arith.constant 0 : index
    %131 = vector.load %arg9[%c0_44, %c0_45] : memref<128x128xbf16, #tpu.memory_space<vmem>>, vector<128x128xbf16>
    %cst_46 = arith.constant dense<0.000000e+00> : vector<8x128xf32>
    %132 = tpu.matmul %130, %131, %cst_46 {dimension_numbers = #tpu.dot_dimension_numbers<[1], [0], [0], [1], [0, 0, 1, 1], [], []>} : vector<8x128xbf16>, vector<128x128xbf16>, vector<8x128xf32> -> vector<8x128xf32>
    %133 = vector.broadcast %104 : vector<1x128xf32> to vector<8x128xf32>
    %134 = arith.addf %132, %133 : vector<8x128xf32>
    %135 = tpu.iota {dimensions = array<i32: 1>} : vector<8x128xi32>
    %c2_i32 = arith.constant 2 : i32
    %136 = vector.broadcast %c2_i32 : i32 to vector<8x128xi32>
    %137 = arith.cmpi slt, %135, %136 : vector<8x128xi32>
    %cst_47 = arith.constant 0xFF800000 : f32
    %138 = vector.broadcast %cst_47 : f32 to vector<8x128xf32>
    %139 = arith.select %137, %134, %138 : vector<8x128xi1>, vector<8x128xf32>
    %cst_48 = arith.constant dense<0xFF800000> : vector<8xf32>
    %140 = vector.multi_reduction <maximumf>, %139, %cst_48 [1] : vector<8x128xf32> to vector<8xf32>
    %141 = vector.shape_cast %140 : vector<8xf32> to vector<8x1xf32>
    %142 = vector.broadcast %141 : vector<8x1xf32> to vector<8x128xf32>
    %143 = arith.subf %134, %142 : vector<8x128xf32>
    %144 = math.exp %143 : vector<8x128xf32>
    %cst_49 = arith.constant 0.000000e+00 : f32
    %145 = vector.broadcast %cst_49 : f32 to vector<8x128xf32>
    %146 = arith.select %137, %144, %145 : vector<8x128xi1>, vector<8x128xf32>
    %cst_50 = arith.constant dense<0.000000e+00> : vector<8xf32>
    %147 = vector.multi_reduction <add>, %146, %cst_50 [1] : vector<8x128xf32> to vector<8xf32>
    %148 = vector.shape_cast %147 : vector<8xf32> to vector<8x1xf32>
    %149 = tpu.reciprocal %148 {approx = true} : vector<8x1xf32> -> vector<8x1xf32>
    %150 = vector.broadcast %149 : vector<8x1xf32> to vector<8x128xf32>
    %151 = arith.mulf %146, %150 : vector<8x128xf32>
    %c0_51 = arith.constant 0 : index
    %c0_52 = arith.constant 0 : index
    %152 = vector.load %arg10[%c0_51, %c0_52] : memref<8x128xf32, #tpu.memory_space<vmem>>, vector<8x128xf32>
    tpu.vector_store %arg10[%c0_51, %c0_52], %151 {strides = array<i32>} : memref<8x128xf32, #tpu.memory_space<vmem>>, vector<8x128xf32>,
    return
  }
  func.func @transform_0(%arg0: i32) -> (i32, i32) {
    %c0_i32 = arith.constant 0 : i32
    %c0_i32_0 = arith.constant 0 : i32
    %c0_i32_1 = arith.constant 0 : i32
    return %c0_i32, %c0_i32_0 : i32, i32
  }
  func.func @transform_1(%arg0: i32) -> (i32, i32) {
    %c0_i32 = arith.constant 0 : i32
    %c0_i32_0 = arith.constant 0 : i32
    %c0_i32_1 = arith.constant 0 : i32
    return %c0_i32, %c0_i32_0 : i32, i32
  }
  func.func @transform_2(%arg0: i32) -> (i32, i32) {
    %c0_i32 = arith.constant 0 : i32
    %c0_i32_0 = arith.constant 0 : i32
    %c0_i32_1 = arith.constant 0 : i32
    return %c0_i32, %c0_i32_0 : i32, i32
  }
  func.func @transform_3(%arg0: i32) -> (i32, i32) {
    %c0_i32 = arith.constant 0 : i32
    %c0_i32_0 = arith.constant 0 : i32
    %c0_i32_1 = arith.constant 0 : i32
    return %c0_i32, %c0_i32_0 : i32, i32
  }
  func.func @transform_4(%arg0: i32) -> (i32, i32) {
    %c0_i32 = arith.constant 0 : i32
    %c0_i32_0 = arith.constant 0 : i32
    %c0_i32_1 = arith.constant 0 : i32
    return %c0_i32, %c0_i32_0 : i32, i32
  }
  func.func @transform_5(%arg0: i32) -> (i32, i32) {
    %c0_i32 = arith.constant 0 : i32
    %c0_i32_0 = arith.constant 0 : i32
    %c0_i32_1 = arith.constant 0 : i32
    return %c0_i32, %c0_i32_0 : i32, i32
  }
  func.func @transform_6(%arg0: i32) -> (i32, i32) {
    %c0_i32 = arith.constant 0 : i32
    %c0_i32_0 = arith.constant 0 : i32
    %c0_i32_1 = arith.constant 0 : i32
    return %c0_i32, %c0_i32_0 : i32, i32
  }
  func.func @transform_7(%arg0: i32) -> (i32, i32) {
    %c0_i32 = arith.constant 0 : i32
    %c0_i32_0 = arith.constant 0 : i32
    %c0_i32_1 = arith.constant 0 : i32
    return %c0_i32, %c0_i32_0 : i32, i32
  }
  func.func @transform_8(%arg0: i32) -> (i32, i32) {
    %c0_i32 = arith.constant 0 : i32
    %c0_i32_0 = arith.constant 0 : i32
    %c0_i32_1 = arith.constant 0 : i32
    return %c0_i32, %c0_i32_0 : i32, i32
  }
  func.func @transform_9(%arg0: i32) -> (i32, i32) {
    %c0_i32 = arith.constant 0 : i32
    %c0_i32_0 = arith.constant 0 : i32
    %c0_i32_1 = arith.constant 0 : i32
    return %c0_i32, %c0_i32_0 : i32, i32
  }
}

</mosaic_0001>

<llo_original>
// kernel: _fused_forward.1
$region0: #{_fused_forward.1}
  #allocation0 [shape = 'u32[]', space=smem, size = 0x4, offset = 0x4, fixed_abs, tag = 'smem constant byte address 0x4 - core index']
  #allocation1 [shape = 'u32[144,128]{1,0:T(1,128)}', space=vmem, size = 0x12000, scoped, tag = 'internal scratch']
  %s0 = inlined_call_operand.vmem [shape: f32[8,256], index: 0, kind: input, shape index: {}]
  %s1 = inlined_call_operand.vmem [shape: f32[8,256], index: 1, kind: input, shape index: {}]
  %s2 = inlined_call_operand.hbm [shape: bf16[256,256], index: 2, kind: input, shape index: {}]
  %s3 = inlined_call_operand.vmem [shape: f32[8,256], index: 3, kind: input, shape index: {}]
  %s4 = inlined_call_operand.hbm [shape: bf16[256,256], index: 4, kind: input, shape index: {}]
  %s5 = inlined_call_operand.vmem [shape: f32[8,256], index: 5, kind: input, shape index: {}]
  %s6 = inlined_call_operand.vmem [shape: bf16[256,128], index: 6, kind: input, shape index: {}]
  %s7 = inlined_call_operand.vmem [shape: f32[8,128], index: 7, kind: input, shape index: {}]
  %s8 = inlined_call_operand.vmem [shape: bf16[128,128], index: 8, kind: input, shape index: {}]
  %s9 = inlined_call_operand.vmem [shape: f32[8,128], index: 9, kind: output, shape index: {}]
  %s10 = sld [smem:[#allocation0]]
  $region54: #{_fused_forward.1} parent=0
    _
  %s12 = ssub.s32 1, %s10
  %s13 = scalar_select 0, %s12, %s10
  $region1: #{_fused_forward.1} parent=0
    #allocation2 [shape = 'u8[131072]{0}', space=vmem, size = 0x20000, scoped, tag = 'input window, operand 2, single buffered']
    #allocation3 [shape = 's32[1]{0}', space=sflag, size = 0x4, scoped, tag = 'scoped memory for _fused_forward.1']
    #allocation4 [shape = 'u8[131072]{0}', space=vmem, size = 0x20000, scoped, tag = 'input window, operand 4, single buffered']
    #allocation5 [shape = 's32[1]{0}', space=sflag, size = 0x4, scoped, tag = 'scoped memory for _fused_forward.1']
    %14 = vsyncpa [#allocation3], 0
    %15 = vsyncpa [#allocation5], 0
    // Predicated region
    $region2: #{_fused_forward.1} parent=1 // pred_check
      _
    $region3: #{_fused_forward.1} parent=1 // pred_check_branch
      %17 = sbr.rel (0) target = $region5
    $region4: #{_fused_forward.1} parent=1 // pred_region
      _
    $region5: #{_fused_forward.1} parent=1 // pred_fallthru
      _
    // Predicated region
    $region6: #{_fused_forward.1} parent=1 // pred_check
      _
    $region7: #{_fused_forward.1} parent=1 // pred_check_branch
      %19 = sbr.rel (0) target = $region9
    $region8: #{_fused_forward.1} parent=1 // pred_region
      _
    $region9: #{_fused_forward.1} parent=1 // pred_fallthru
      _
    // Predicated region
    $region10: #{_fused_forward.1} parent=1 // pred_check
      _
    $region11: #{_fused_forward.1} parent=1 // pred_check_branch
      %21 = sbr.rel (0) target = $region13
    $region12: #{_fused_forward.1} parent=1 // pred_region
      %s23 = ssub.s32 4096, 4096
      %24 = vsyncadd [#allocation3], %s23
      %s25 = sshll.u32 [#allocation2], 4
      %s26 = int_to_ptr.vmem [resolvable:$true] %s25
      %31 = dma.hbm_to_vmem [thread:$0]  %s2, 4096, %s26, [#allocation3], 128, 128, 8
    $region13: #{_fused_forward.1} parent=1 // pred_fallthru
      _
    // Predicated region
    $region14: #{_fused_forward.1} parent=1 // pred_check
      _
    $region15: #{_fused_forward.1} parent=1 // pred_check_branch
      %33 = sbr.rel (0) target = $region17
    $region16: #{_fused_forward.1} parent=1 // pred_region
      _
    $region17: #{_fused_forward.1} parent=1 // pred_fallthru
      _
    // Predicated region
    $region18: #{_fused_forward.1} parent=1 // pred_check
      _
    $region19: #{_fused_forward.1} parent=1 // pred_check_branch
      %35 = sbr.rel (0) target = $region21
    $region20: #{_fused_forward.1} parent=1 // pred_region
      %s37 = ssub.s32 4096, 4096
      %38 = vsyncadd [#allocation5], %s37
      %s39 = sshll.u32 [#allocation4], 4
      %s40 = int_to_ptr.vmem [resolvable:$true] %s39
      %45 = dma.hbm_to_vmem [thread:$0]  %s4, 4096, %s40, [#allocation5], 128, 128, 8
    $region21: #{_fused_forward.1} parent=1 // pred_fallthru
      _
    // Predicated region
    $region22: #{_fused_forward.1} parent=1 // pred_check
      _
    $region23: #{_fused_forward.1} parent=1 // pred_check_branch
      %47 = sbr.rel (0) target = $region25
    $region24: #{_fused_forward.1} parent=1 // pred_region
      _
    $region25: #{_fused_forward.1} parent=1 // pred_fallthru
      _
    // Predicated region
    $region26: #{_fused_forward.1} parent=1 // pred_check
      _
    $region27: #{_fused_forward.1} parent=1 // pred_check_branch
      %49 = sbr.rel (0) target = $region29
    $region28: #{_fused_forward.1} parent=1 // pred_region
      _
    $region29: #{_fused_forward.1} parent=1 // pred_fallthru
      _
    // Predicated region
    $region30: #{_fused_forward.1} parent=1 // pred_check
      _
    $region31: #{_fused_forward.1} parent=1 // pred_check_branch
      %51 = sbr.rel (0) target = $region33
    $region32: #{_fused_forward.1} parent=1 // pred_region
      _
    $region33: #{_fused_forward.1} parent=1 // pred_fallthru
      _
    // Predicated region
    $region34: #{_fused_forward.1} parent=1 // pred_check
      _
    $region35: #{_fused_forward.1} parent=1 // pred_check_branch
      %53 = sbr.rel (0) target = $region37
    $region36: #{_fused_forward.1} parent=1 // pred_region
      _
    $region37: #{_fused_forward.1} parent=1 // pred_fallthru
      _
    // Predicated region
    $region38: #{_fused_forward.1} parent=1 // pred_check
      _
    $region39: #{_fused_forward.1} parent=1 // pred_check_branch
      %55 = sbr.rel (0) target = $region41
    $region40: #{_fused_forward.1} parent=1 // pred_region
      %56 = dma.done [#allocation3], 4096
    $region41: #{_fused_forward.1} parent=1 // pred_fallthru
      _
    // Predicated region
    $region42: #{_fused_forward.1} parent=1 // pred_check
      _
    $region43: #{_fused_forward.1} parent=1 // pred_check_branch
      %58 = sbr.rel (0) target = $region45
    $region44: #{_fused_forward.1} parent=1 // pred_region
      %59 = dma.done [#allocation5], 4096
    $region45: #{_fused_forward.1} parent=1 // pred_fallthru
      _
    %v61 = vld [vmem:[%s0] sm:$0xff]
    %v62 = vld [vmem:[%s0 + $0x8] sm:$0xff]
    %v63 = vld [vmem:[%s1] sm:$0xff]
    %v64 = vld [vmem:[%s1 + $0x8] sm:$0xff]
    %v65 = vrot.slane %v61, 4
    %v66 = vadd.f32 %v61, %v65
    %v67 = vrot.slane %v66, 2
    %v68 = vadd.f32 %v66, %v67
    %v69 = vrot.slane %v68, 1
    %v70 = vadd.f32 %v68, %v69
    %v71 = vrot.slane %v62, 4
    %v72 = vadd.f32 %v62, %v71
    %v73 = vrot.slane %v72, 2
    %v74 = vadd.f32 %v72, %v73
    %v75 = vrot.slane %v74, 1
    %v76 = vadd.f32 %v74, %v75
    %v77 = vmul.f32 %v70, 0.125
    %v78 = vmul.f32 %v76, 0.125
    %v79 = vmul.f32 %v61, %v61
    %v80 = vmul.f32 %v62, %v62
    %v81 = vrot.slane %v79, 4
    %v82 = vadd.f32 %v79, %v81
    %v83 = vrot.slane %v82, 2
    %v84 = vadd.f32 %v82, %v83
    %v85 = vrot.slane %v84, 1
    %v86 = vadd.f32 %v84, %v85
    %v87 = vrot.slane %v80, 4
    %v88 = vadd.f32 %v80, %v87
    %v89 = vrot.slane %v88, 2
    %v90 = vadd.f32 %v88, %v89
    %v91 = vrot.slane %v90, 1
    %v92 = vadd.f32 %v90, %v91
    %v93 = vmul.f32 %v86, 0.125
    %v94 = vmul.f32 %v92, 0.125
    %v95 = vmul.f32 %v77, %v77
    %v96 = vmul.f32 %v78, %v78
    %v97 = vsub.f32 %v93, %v95
    %v98 = vsub.f32 %v94, %v96
    %v99 = vmax.f32 %v97, 0.0
    %v100 = vmax.f32 %v98, 0.0
    %v101 = vadd.f32 %v99, 1e-05
    %v102 = vadd.f32 %v100, 1e-05
    %v103 = vrsqrt.pop %v101
    %v104 = vrsqrt.pop %v102
    %v105 = vmul.f32 %v103, %v63
    %v106 = vmul.f32 %v104, %v64
    %v107 = vmul.f32 %v77, %v105
    %v108 = vmul.f32 %v78, %v106
    %v111 = vrot.slane %v107, 7
    %v112 = vrot.slane %v108, 7
    %v115 = vsub.f32 %v63, %v111
    %v116 = vsub.f32 %v64, %v112
    %v117 = vlaneseq
    %v118 = vshrl.u32 %v117, 7
    %v119 = vsub.s32 0, %v118
    %v120 = vrot.slane %v105, %v119
    %v121 = vlaneseq
    %v122 = vshrl.u32 %v121, 7
    %v123 = vsub.s32 0, %v122
    %v124 = vrot.slane %v106, %v123
    %v125 = vmul.f32 %v61, %v120
    %v126 = vmul.f32 %v62, %v124
    %v127 = vlaneseq
    %v128 = vshrl.u32 %v127, 7
    %v129 = vsub.s32 1, %v128
    %v130 = vrot.slane %v115, %v129
    %v131 = vlaneseq
    %v132 = vshrl.u32 %v131, 7
    %v133 = vsub.s32 1, %v132
    %v134 = vrot.slane %v116, %v133
    %v135 = vadd.f32 %v125, %v130
    %v136 = vadd.f32 %v126, %v134
    %v137 = vpack.c.bf16 %v135, %v135
    %v138 = vpack.c.bf16 %v136, %v136
    %v139 = vld [vmem:[#allocation2] sm:$0xff]
    %v140 = vld [vmem:[#allocation2 + $0x8] sm:$0xff]
    %v141 = vld [vmem:[#allocation2 + $0x10] sm:$0xff]
    %v142 = vld [vmem:[#allocation2 + $0x18] sm:$0xff]
    %v143 = vld [vmem:[#allocation2 + $0x20] sm:$0xff]
    %v144 = vld [vmem:[#allocation2 + $0x28] sm:$0xff]
    %v145 = vld [vmem:[#allocation2 + $0x30] sm:$0xff]
    %v146 = vld [vmem:[#allocation2 + $0x38] sm:$0xff]
    %v147 = vld [vmem:[#allocation2 + $0x40] sm:$0xff]
    %v148 = vld [vmem:[#allocation2 + $0x48] sm:$0xff]
    %v149 = vld [vmem:[#allocation2 + $0x50] sm:$0xff]
    %v150 = vld [vmem:[#allocation2 + $0x58] sm:$0xff]
    %v151 = vld [vmem:[#allocation2 + $0x60] sm:$0xff]
    %v152 = vld [vmem:[#allocation2 + $0x68] sm:$0xff]
    %v153 = vld [vmem:[#allocation2 + $0x70] sm:$0xff]
    %v154 = vld [vmem:[#allocation2 + $0x78] sm:$0xff]
    %v155 = vld [vmem:[#allocation2 + $0x80] sm:$0xff]
    %v156 = vld [vmem:[#allocation2 + $0x88] sm:$0xff]
    %v157 = vld [vmem:[#allocation2 + $0x90] sm:$0xff]
    %v158 = vld [vmem:[#allocation2 + $0x98] sm:$0xff]
    %v159 = vld [vmem:[#allocation2 + $0xa0] sm:$0xff]
    %v160 = vld [vmem:[#allocation2 + $0xa8] sm:$0xff]
    %v161 = vld [vmem:[#allocation2 + $0xb0] sm:$0xff]
    %v162 = vld [vmem:[#allocation2 + $0xb8] sm:$0xff]
    %v163 = vld [vmem:[#allocation2 + $0xc0] sm:$0xff]
    %v164 = vld [vmem:[#allocation2 + $0xc8] sm:$0xff]
    %v165 = vld [vmem:[#allocation2 + $0xd0] sm:$0xff]
    %v166 = vld [vmem:[#allocation2 + $0xd8] sm:$0xff]
    %v167 = vld [vmem:[#allocation2 + $0xe0] sm:$0xff]
    %v168 = vld [vmem:[#allocation2 + $0xe8] sm:$0xff]
    %v169 = vld [vmem:[#allocation2 + $0xf0] sm:$0xff]
    %v170 = vld [vmem:[#allocation2 + $0xf8] sm:$0xff]
    %v171 = vlaneseq
    %v172 = vshrl.u32 %v171, 7
    %v173 = vsub.s32 2, %v172
    %v174 = vrot.slane %v63, %v173
    %v175 = vlaneseq
    %v176 = vshrl.u32 %v175, 7
    %v177 = vsub.s32 2, %v176
    %v178 = vrot.slane %v64, %v177
    %v211 = vunpack.c.l.b16 %v139
    %v212 = vunpack.c.h.b16 %v139
    %v213 = vunpack.c.l.b16 %v140
    %v214 = vunpack.c.h.b16 %v140
    %v215 = vunpack.c.l.b16 %v141
    %v216 = vunpack.c.h.b16 %v141
    %v217 = vunpack.c.l.b16 %v142
    %v218 = vunpack.c.h.b16 %v142
    %v219 = vunpack.c.l.b16 %v143
    %v220 = vunpack.c.h.b16 %v143
    %v221 = vunpack.c.l.b16 %v144
    %v222 = vunpack.c.h.b16 %v144
    %v223 = vunpack.c.l.b16 %v145
    %v224 = vunpack.c.h.b16 %v145
    %v225 = vunpack.c.l.b16 %v146
    %v226 = vunpack.c.h.b16 %v146
    %v227 = vunpack.c.l.b16 %v147
    %v228 = vunpack.c.h.b16 %v147
    %v229 = vunpack.c.l.b16 %v148
    %v230 = vunpack.c.h.b16 %v148
    %v231 = vunpack.c.l.b16 %v149
    %v232 = vunpack.c.h.b16 %v149
    %v233 = vunpack.c.l.b16 %v150
    %v234 = vunpack.c.h.b16 %v150
    %v235 = vunpack.c.l.b16 %v151
    %v236 = vunpack.c.h.b16 %v151
    %v237 = vunpack.c.l.b16 %v152
    %v238 = vunpack.c.h.b16 %v152
    %v239 = vunpack.c.l.b16 %v153
    %v240 = vunpack.c.h.b16 %v153
    %v241 = vunpack.c.l.b16 %v154
    %v242 = vunpack.c.h.b16 %v154
    %v243 = vunpack.c.l.b16 %v155
    %v244 = vunpack.c.h.b16 %v155
    %v245 = vunpack.c.l.b16 %v156
    %v246 = vunpack.c.h.b16 %v156
    %v247 = vunpack.c.l.b16 %v157
    %v248 = vunpack.c.h.b16 %v157
    %v249 = vunpack.c.l.b16 %v158
    %v250 = vunpack.c.h.b16 %v158
    %v251 = vunpack.c.l.b16 %v159
    %v252 = vunpack.c.h.b16 %v159
    %v253 = vunpack.c.l.b16 %v160
    %v254 = vunpack.c.h.b16 %v160
    %v255 = vunpack.c.l.b16 %v161
    %v256 = vunpack.c.h.b16 %v161
    %v257 = vunpack.c.l.b16 %v162
    %v258 = vunpack.c.h.b16 %v162
    %v259 = vunpack.c.l.b16 %v163
    %v260 = vunpack.c.h.b16 %v163
    %v261 = vunpack.c.l.b16 %v164
    %v262 = vunpack.c.h.b16 %v164
    %v263 = vunpack.c.l.b16 %v165
    %v264 = vunpack.c.h.b16 %v165
    %v265 = vunpack.c.l.b16 %v166
    %v266 = vunpack.c.h.b16 %v166
    %v267 = vunpack.c.l.b16 %v167
    %v268 = vunpack.c.h.b16 %v167
    %v269 = vunpack.c.l.b16 %v168
    %v270 = vunpack.c.h.b16 %v168
    %v271 = vunpack.c.l.b16 %v169
    %v272 = vunpack.c.h.b16 %v169
    %v273 = vunpack.c.l.b16 %v170
    %v274 = vunpack.c.h.b16 %v170
    %v275 = vpack.c.b16 %v213, %v211
    %v276 = vpack.c.b16 %v214, %v212
    %v277 = vpack.c.b16 %v217, %v215
    %v278 = vpack.c.b16 %v218, %v216
    %v279 = vpack.c.b16 %v221, %v219
    %v280 = vpack.c.b16 %v222, %v220
    %v281 = vpack.c.b16 %v225, %v223
    %v282 = vpack.c.b16 %v226, %v224
    %v283 = vpack.c.b16 %v229, %v227
    %v284 = vpack.c.b16 %v230, %v228
    %v285 = vpack.c.b16 %v233, %v231
    %v286 = vpack.c.b16 %v234, %v232
    %v287 = vpack.c.b16 %v237, %v235
    %v288 = vpack.c.b16 %v238, %v236
    %v289 = vpack.c.b16 %v241, %v239
    %v290 = vpack.c.b16 %v242, %v240
    %v291 = vpack.c.b16 %v245, %v243
    %v292 = vpack.c.b16 %v246, %v244
    %v293 = vpack.c.b16 %v249, %v247
    %v294 = vpack.c.b16 %v250, %v248
    %v295 = vpack.c.b16 %v253, %v251
    %v296 = vpack.c.b16 %v254, %v252
    %v297 = vpack.c.b16 %v257, %v255
    %v298 = vpack.c.b16 %v258, %v256
    %v299 = vpack.c.b16 %v261, %v259
    %v300 = vpack.c.b16 %v262, %v260
    %v301 = vpack.c.b16 %v265, %v263
    %v302 = vpack.c.b16 %v266, %v264
    %v303 = vpack.c.b16 %v269, %v267
    %v304 = vpack.c.b16 %v270, %v268
    %v305 = vpack.c.b16 %v273, %v271
    %v306 = vpack.c.b16 %v274, %v272
    %339 = vmatprep.subr.bf16.mxu0 %v276
    %340 = vmatpush1.bf16.msra.mxu0 %v275
    %341 = vmatprep.subr.bf16.mxu0 %v278
    %342 = vmatpush1.bf16.msra.mxu0 %v277
    %343 = vmatprep.subr.bf16.mxu0 %v280
    %344 = vmatpush1.bf16.msra.mxu0 %v279
    %345 = vmatprep.subr.bf16.mxu0 %v282
    %346 = vmatpush1.bf16.msra.mxu0 %v281
    %347 = vmatprep.subr.bf16.mxu0 %v284
    %348 = vmatpush1.bf16.msra.mxu0 %v283
    %349 = vmatprep.subr.bf16.mxu0 %v286
    %350 = vmatpush1.bf16.msra.mxu0 %v285
    %351 = vmatprep.subr.bf16.mxu0 %v288
    %352 = vmatpush1.bf16.msra.mxu0 %v287
    %353 = vmatprep.subr.bf16.mxu0 %v290
    %354 = vmatpush1.bf16.msra.mxu0 %v289
    %355 = vmatprep.subr.bf16.mxu0 %v292
    %356 = vmatpush1.bf16.msra.mxu0 %v291
    %357 = vmatprep.subr.bf16.mxu0 %v294
    %358 = vmatpush1.bf16.msra.mxu0 %v293
    %359 = vmatprep.subr.bf16.mxu0 %v296
    %360 = vmatpush1.bf16.msra.mxu0 %v295
    %361 = vmatprep.subr.bf16.mxu0 %v298
    %362 = vmatpush1.bf16.msra.mxu0 %v297
    %363 = vmatprep.subr.bf16.mxu0 %v300
    %364 = vmatpush1.bf16.msra.mxu0 %v299
    %365 = vmatprep.subr.bf16.mxu0 %v302
    %366 = vmatpush1.bf16.msra.mxu0 %v301
    %367 = vmatprep.subr.bf16.mxu0 %v304
    %368 = vmatpush1.bf16.msra.mxu0 %v303
    %369 = vmatprep.subr.bf16.mxu0 %v306
    %370 = vmatpush1.bf16.msra.mxu0 %v305
    %371 = vmatprep.mubr.bf16.mxu0 %v138
    %372 = vmatmul.mubr.bf16.gmra.mrb[0].mxu0 %v137
    %v373 = vpop.f32.mrb[0].mxu0
    %v374 = vadd.f32 %v174, %v373
    %v375 = vpop.f32.mrb[0].mxu0
    %v376 = vadd.f32 %v178, %v375
    %v377 = vpop.f32.mrb[0].mxu0
    %v378 = vpop.f32.mrb[0].mxu0
    %379 = vdwg.mxu0
    %v380 = vld [vmem:[%s3] sm:$0xff]
    %v381 = vld [vmem:[%s3 + $0x8] sm:$0xff]
    %v382 = vrot.slane %v374, 4
    %v383 = vadd.f32 %v374, %v382
    %v384 = vrot.slane %v383, 2
    %v385 = vadd.f32 %v383, %v384
    %v386 = vrot.slane %v385, 1
    %v387 = vadd.f32 %v385, %v386
    %v388 = vrot.slane %v376, 4
    %v389 = vadd.f32 %v376, %v388
    %v390 = vrot.slane %v389, 2
    %v391 = vadd.f32 %v389, %v390
    %v392 = vrot.slane %v391, 1
    %v393 = vadd.f32 %v391, %v392
    %v394 = vmul.f32 %v387, 0.125
    %v395 = vmul.f32 %v393, 0.125
    %v396 = vmul.f32 %v374, %v374
    %v397 = vmul.f32 %v376, %v376
    %v398 = vrot.slane %v396, 4
    %v399 = vadd.f32 %v396, %v398
    %v400 = vrot.slane %v399, 2
    %v401 = vadd.f32 %v399, %v400
    %v402 = vrot.slane %v401, 1
    %v403 = vadd.f32 %v401, %v402
    %v404 = vrot.slane %v397, 4
    %v405 = vadd.f32 %v397, %v404
    %v406 = vrot.slane %v405, 2
    %v407 = vadd.f32 %v405, %v406
    %v408 = vrot.slane %v407, 1
    %v409 = vadd.f32 %v407, %v408
    %v410 = vmul.f32 %v403, 0.125
    %v411 = vmul.f32 %v409, 0.125
    %v412 = vmul.f32 %v394, %v394
    %v413 = vmul.f32 %v395, %v395
    %v414 = vsub.f32 %v410, %v412
    %v415 = vsub.f32 %v411, %v413
    %v416 = vmax.f32 %v414, 0.0
    %v417 = vmax.f32 %v415, 0.0
    %v418 = vadd.f32 %v416, 1e-05
    %v419 = vadd.f32 %v417, 1e-05
    %v420 = vrsqrt.pop %v418
    %v421 = vrsqrt.pop %v419
    %v422 = vmul.f32 %v420, %v380
    %v423 = vmul.f32 %v421, %v381
    %v424 = vmul.f32 %v394, %v422
    %v425 = vmul.f32 %v395, %v423
    %v428 = vrot.slane %v424, 7
    %v429 = vrot.slane %v425, 7
    %v432 = vsub.f32 %v380, %v428
    %v433 = vsub.f32 %v381, %v429
    %v434 = vlaneseq
    %v435 = vshrl.u32 %v434, 7
    %v436 = vsub.s32 0, %v435
    %v437 = vrot.slane %v422, %v436
    %v438 = vlaneseq
    %v439 = vshrl.u32 %v438, 7
    %v440 = vsub.s32 0, %v439
    %v441 = vrot.slane %v423, %v440
    %v442 = vmul.f32 %v374, %v437
    %v443 = vmul.f32 %v376, %v441
    %v444 = vlaneseq
    %v445 = vshrl.u32 %v444, 7
    %v446 = vsub.s32 1, %v445
    %v447 = vrot.slane %v432, %v446
    %v448 = vlaneseq
    %v449 = vshrl.u32 %v448, 7
    %v450 = vsub.s32 1, %v449
    %v451 = vrot.slane %v433, %v450
    %v452 = vadd.f32 %v442, %v447
    %v453 = vadd.f32 %v443, %v451
    %v454 = vmax.f32 %v452, 0.0
    %v455 = vmax.f32 %v453, 0.0
    %v456 = vpack.c.bf16 %v454, %v454
    %v457 = vpack.c.bf16 %v455, %v455
    %v458 = vld [vmem:[#allocation4] sm:$0xff]
    %v459 = vld [vmem:[#allocation4 + $0x8] sm:$0xff]
    %v460 = vld [vmem:[#allocation4 + $0x10] sm:$0xff]
    %v461 = vld [vmem:[#allocation4 + $0x18] sm:$0xff]
    %v462 = vld [vmem:[#allocation4 + $0x20] sm:$0xff]
    %v463 = vld [vmem:[#allocation4 + $0x28] sm:$0xff]
    %v464 = vld [vmem:[#allocation4 + $0x30] sm:$0xff]
    %v465 = vld [vmem:[#allocation4 + $0x38] sm:$0xff]
    %v466 = vld [vmem:[#allocation4 + $0x40] sm:$0xff]
    %v467 = vld [vmem:[#allocation4 + $0x48] sm:$0xff]
    %v468 = vld [vmem:[#allocation4 + $0x50] sm:$0xff]
    %v469 = vld [vmem:[#allocation4 + $0x58] sm:$0xff]
    %v470 = vld [vmem:[#allocation4 + $0x60] sm:$0xff]
    %v471 = vld [vmem:[#allocation4 + $0x68] sm:$0xff]
    %v472 = vld [vmem:[#allocation4 + $0x70] sm:$0xff]
    %v473 = vld [vmem:[#allocation4 + $0x78] sm:$0xff]
    %v474 = vld [vmem:[#allocation4 + $0x80] sm:$0xff]
    %v475 = vld [vmem:[#allocation4 + $0x88] sm:$0xff]
    %v476 = vld [vmem:[#allocation4 + $0x90] sm:$0xff]
    %v477 = vld [vmem:[#allocation4 + $0x98] sm:$0xff]
    %v478 = vld [vmem:[#allocation4 + $0xa0] sm:$0xff]
    %v479 = vld [vmem:[#allocation4 + $0xa8] sm:$0xff]
    %v480 = vld [vmem:[#allocation4 + $0xb0] sm:$0xff]
    %v481 = vld [vmem:[#allocation4 + $0xb8] sm:$0xff]
    %v482 = vld [vmem:[#allocation4 + $0xc0] sm:$0xff]
    %v483 = vld [vmem:[#allocation4 + $0xc8] sm:$0xff]
    %v484 = vld [vmem:[#allocation4 + $0xd0] sm:$0xff]
    %v485 = vld [vmem:[#allocation4 + $0xd8] sm:$0xff]
    %v486 = vld [vmem:[#allocation4 + $0xe0] sm:$0xff]
    %v487 = vld [vmem:[#allocation4 + $0xe8] sm:$0xff]
    %v488 = vld [vmem:[#allocation4 + $0xf0] sm:$0xff]
    %v489 = vld [vmem:[#allocation4 + $0xf8] sm:$0xff]
    %v490 = vlaneseq
    %v491 = vshrl.u32 %v490, 7
    %v492 = vsub.s32 2, %v491
    %v493 = vrot.slane %v380, %v492
    %v494 = vlaneseq
    %v495 = vshrl.u32 %v494, 7
    %v496 = vsub.s32 2, %v495
    %v497 = vrot.slane %v381, %v496
    %v530 = vunpack.c.l.b16 %v458
    %v531 = vunpack.c.h.b16 %v458
    %v532 = vunpack.c.l.b16 %v459
    %v533 = vunpack.c.h.b16 %v459
    %v534 = vunpack.c.l.b16 %v460
    %v535 = vunpack.c.h.b16 %v460
    %v536 = vunpack.c.l.b16 %v461
    %v537 = vunpack.c.h.b16 %v461
    %v538 = vunpack.c.l.b16 %v462
    %v539 = vunpack.c.h.b16 %v462
    %v540 = vunpack.c.l.b16 %v463
    %v541 = vunpack.c.h.b16 %v463
    %v542 = vunpack.c.l.b16 %v464
    %v543 = vunpack.c.h.b16 %v464
    %v544 = vunpack.c.l.b16 %v465
    %v545 = vunpack.c.h.b16 %v465
    %v546 = vunpack.c.l.b16 %v466
    %v547 = vunpack.c.h.b16 %v466
    %v548 = vunpack.c.l.b16 %v467
    %v549 = vunpack.c.h.b16 %v467
    %v550 = vunpack.c.l.b16 %v468
    %v551 = vunpack.c.h.b16 %v468
    %v552 = vunpack.c.l.b16 %v469
    %v553 = vunpack.c.h.b16 %v469
    %v554 = vunpack.c.l.b16 %v470
    %v555 = vunpack.c.h.b16 %v470
    %v556 = vunpack.c.l.b16 %v471
    %v557 = vunpack.c.h.b16 %v471
    %v558 = vunpack.c.l.b16 %v472
    %v559 = vunpack.c.h.b16 %v472
    %v560 = vunpack.c.l.b16 %v473
    %v561 = vunpack.c.h.b16 %v473
    %v562 = vunpack.c.l.b16 %v474
    %v563 = vunpack.c.h.b16 %v474
    %v564 = vunpack.c.l.b16 %v475
    %v565 = vunpack.c.h.b16 %v475
    %v566 = vunpack.c.l.b16 %v476
    %v567 = vunpack.c.h.b16 %v476
    %v568 = vunpack.c.l.b16 %v477
    %v569 = vunpack.c.h.b16 %v477
    %v570 = vunpack.c.l.b16 %v478
    %v571 = vunpack.c.h.b16 %v478
    %v572 = vunpack.c.l.b16 %v479
    %v573 = vunpack.c.h.b16 %v479
    %v574 = vunpack.c.l.b16 %v480
    %v575 = vunpack.c.h.b16 %v480
    %v576 = vunpack.c.l.b16 %v481
    %v577 = vunpack.c.h.b16 %v481
    %v578 = vunpack.c.l.b16 %v482
    %v579 = vunpack.c.h.b16 %v482
    %v580 = vunpack.c.l.b16 %v483
    %v581 = vunpack.c.h.b16 %v483
    %v582 = vunpack.c.l.b16 %v484
    %v583 = vunpack.c.h.b16 %v484
    %v584 = vunpack.c.l.b16 %v485
    %v585 = vunpack.c.h.b16 %v485
    %v586 = vunpack.c.l.b16 %v486
    %v587 = vunpack.c.h.b16 %v486
    %v588 = vunpack.c.l.b16 %v487
    %v589 = vunpack.c.h.b16 %v487
    %v590 = vunpack.c.l.b16 %v488
    %v591 = vunpack.c.h.b16 %v488
    %v592 = vunpack.c.l.b16 %v489
    %v593 = vunpack.c.h.b16 %v489
    %v594 = vpack.c.b16 %v532, %v530
    %v595 = vpack.c.b16 %v533, %v531
    %v596 = vpack.c.b16 %v536, %v534
    %v597 = vpack.c.b16 %v537, %v535
    %v598 = vpack.c.b16 %v540, %v538
    %v599 = vpack.c.b16 %v541, %v539
    %v600 = vpack.c.b16 %v544, %v542
    %v601 = vpack.c.b16 %v545, %v543
    %v602 = vpack.c.b16 %v548, %v546
    %v603 = vpack.c.b16 %v549, %v547
    %v604 = vpack.c.b16 %v552, %v550
    %v605 = vpack.c.b16 %v553, %v551
    %v606 = vpack.c.b16 %v556, %v554
    %v607 = vpack.c.b16 %v557, %v555
    %v608 = vpack.c.b16 %v560, %v558
    %v609 = vpack.c.b16 %v561, %v559
    %v610 = vpack.c.b16 %v564, %v562
    %v611 = vpack.c.b16 %v565, %v563
    %v612 = vpack.c.b16 %v568, %v566
    %v613 = vpack.c.b16 %v569, %v567
    %v614 = vpack.c.b16 %v572, %v570
    %v615 = vpack.c.b16 %v573, %v571
    %v616 = vpack.c.b16 %v576, %v574
    %v617 = vpack.c.b16 %v577, %v575
    %v618 = vpack.c.b16 %v580, %v578
    %v619 = vpack.c.b16 %v581, %v579
    %v620 = vpack.c.b16 %v584, %v582
    %v621 = vpack.c.b16 %v585, %v583
    %v622 = vpack.c.b16 %v588, %v586
    %v623 = vpack.c.b16 %v589, %v587
    %v624 = vpack.c.b16 %v592, %v590
    %v625 = vpack.c.b16 %v593, %v591
    %658 = vmatprep.subr.bf16.mxu0 %v595
    %659 = vmatpush1.bf16.msra.mxu0 %v594
    %660 = vmatprep.subr.bf16.mxu0 %v597
    %661 = vmatpush1.bf16.msra.mxu0 %v596
    %662 = vmatprep.subr.bf16.mxu0 %v599
    %663 = vmatpush1.bf16.msra.mxu0 %v598
    %664 = vmatprep.subr.bf16.mxu0 %v601
    %665 = vmatpush1.bf16.msra.mxu0 %v600
    %666 = vmatprep.subr.bf16.mxu0 %v603
    %667 = vmatpush1.bf16.msra.mxu0 %v602
    %668 = vmatprep.subr.bf16.mxu0 %v605
    %669 = vmatpush1.bf16.msra.mxu0 %v604
    %670 = vmatprep.subr.bf16.mxu0 %v607
    %671 = vmatpush1.bf16.msra.mxu0 %v606
    %672 = vmatprep.subr.bf16.mxu0 %v609
    %673 = vmatpush1.bf16.msra.mxu0 %v608
    %674 = vmatprep.subr.bf16.mxu0 %v611
    %675 = vmatpush1.bf16.msra.mxu0 %v610
    %676 = vmatprep.subr.bf16.mxu0 %v613
    %677 = vmatpush1.bf16.msra.mxu0 %v612
    %678 = vmatprep.subr.bf16.mxu0 %v615
    %679 = vmatpush1.bf16.msra.mxu0 %v614
    %680 = vmatprep.subr.bf16.mxu0 %v617
    %681 = vmatpush1.bf16.msra.mxu0 %v616
    %682 = vmatprep.subr.bf16.mxu0 %v619
    %683 = vmatpush1.bf16.msra.mxu0 %v618
    %684 = vmatprep.subr.bf16.mxu0 %v621
    %685 = vmatpush1.bf16.msra.mxu0 %v620
    %686 = vmatprep.subr.bf16.mxu0 %v623
    %687 = vmatpush1.bf16.msra.mxu0 %v622
    %688 = vmatprep.subr.bf16.mxu0 %v625
    %689 = vmatpush1.bf16.msra.mxu0 %v624
    %690 = vmatprep.mubr.bf16.mxu0 %v457
    %691 = vmatmul.mubr.bf16.gmra.mrb[0].mxu0 %v456
    %v692 = vpop.f32.mrb[0].mxu0
    %v693 = vadd.f32 %v493, %v692
    %v694 = vpop.f32.mrb[0].mxu0
    %v695 = vadd.f32 %v497, %v694
    %v696 = vpop.f32.mrb[0].mxu0
    %v697 = vpop.f32.mrb[0].mxu0
    %698 = vdwg.mxu0
    %v699 = vld [vmem:[%s5] sm:$0xff]
    %v700 = vld [vmem:[%s5 + $0x8] sm:$0xff]
    %v701 = vrot.slane %v693, 4
    %v702 = vadd.f32 %v693, %v701
    %v703 = vrot.slane %v702, 2
    %v704 = vadd.f32 %v702, %v703
    %v705 = vrot.slane %v704, 1
    %v706 = vadd.f32 %v704, %v705
    %v707 = vrot.slane %v695, 4
    %v708 = vadd.f32 %v695, %v707
    %v709 = vrot.slane %v708, 2
    %v710 = vadd.f32 %v708, %v709
    %v711 = vrot.slane %v710, 1
    %v712 = vadd.f32 %v710, %v711
    %v713 = vmul.f32 %v706, 0.125
    %v714 = vmul.f32 %v712, 0.125
    %v715 = vmul.f32 %v693, %v693
    %v716 = vmul.f32 %v695, %v695
    %v717 = vrot.slane %v715, 4
    %v718 = vadd.f32 %v715, %v717
    %v719 = vrot.slane %v718, 2
    %v720 = vadd.f32 %v718, %v719
    %v721 = vrot.slane %v720, 1
    %v722 = vadd.f32 %v720, %v721
    %v723 = vrot.slane %v716, 4
    %v724 = vadd.f32 %v716, %v723
    %v725 = vrot.slane %v724, 2
    %v726 = vadd.f32 %v724, %v725
    %v727 = vrot.slane %v726, 1
    %v728 = vadd.f32 %v726, %v727
    %v729 = vmul.f32 %v722, 0.125
    %v730 = vmul.f32 %v728, 0.125
    %v731 = vmul.f32 %v713, %v713
    %v732 = vmul.f32 %v714, %v714
    %v733 = vsub.f32 %v729, %v731
    %v734 = vsub.f32 %v730, %v732
    %v735 = vmax.f32 %v733, 0.0
    %v736 = vmax.f32 %v734, 0.0
    %v737 = vadd.f32 %v735, 1e-05
    %v738 = vadd.f32 %v736, 1e-05
    %v739 = vrsqrt.pop %v737
    %v740 = vrsqrt.pop %v738
    %v741 = vmul.f32 %v739, %v699
    %v742 = vmul.f32 %v740, %v700
    %v743 = vmul.f32 %v713, %v741
    %v744 = vmul.f32 %v714, %v742
    %v747 = vrot.slane %v743, 7
    %v748 = vrot.slane %v744, 7
    %v751 = vsub.f32 %v699, %v747
    %v752 = vsub.f32 %v700, %v748
    %v753 = vlaneseq
    %v754 = vshrl.u32 %v753, 7
    %v755 = vsub.s32 0, %v754
    %v756 = vrot.slane %v741, %v755
    %v757 = vlaneseq
    %v758 = vshrl.u32 %v757, 7
    %v759 = vsub.s32 0, %v758
    %v760 = vrot.slane %v742, %v759
    %v761 = vmul.f32 %v693, %v756
    %v762 = vmul.f32 %v695, %v760
    %v763 = vlaneseq
    %v764 = vshrl.u32 %v763, 7
    %v765 = vsub.s32 1, %v764
    %v766 = vrot.slane %v751, %v765
    %v767 = vlaneseq
    %v768 = vshrl.u32 %v767, 7
    %v769 = vsub.s32 1, %v768
    %v770 = vrot.slane %v752, %v769
    %v771 = vadd.f32 %v761, %v766
    %v772 = vadd.f32 %v762, %v770
    %v773 = vmax.f32 %v771, 0.0
    %v774 = vmax.f32 %v772, 0.0
    %v775 = vpack.c.bf16 %v773, %v773
    %v776 = vpack.c.bf16 %v774, %v774
    %v777 = vld [vmem:[%s6] sm:$0xf]
    %v778 = vld [vmem:[%s6 + $0x4] sm:$0xf]
    %v779 = vld [vmem:[%s6 + $0x8] sm:$0xf]
    %v780 = vld [vmem:[%s6 + $0xc] sm:$0xf]
    %v781 = vld [vmem:[%s6 + $0x10] sm:$0xf]
    %v782 = vld [vmem:[%s6 + $0x14] sm:$0xf]
    %v783 = vld [vmem:[%s6 + $0x18] sm:$0xf]
    %v784 = vld [vmem:[%s6 + $0x1c] sm:$0xf]
    %v785 = vld [vmem:[%s6 + $0x20] sm:$0xf]
    %v786 = vld [vmem:[%s6 + $0x24] sm:$0xf]
    %v787 = vld [vmem:[%s6 + $0x28] sm:$0xf]
    %v788 = vld [vmem:[%s6 + $0x2c] sm:$0xf]
    %v789 = vld [vmem:[%s6 + $0x30] sm:$0xf]
    %v790 = vld [vmem:[%s6 + $0x34] sm:$0xf]
    %v791 = vld [vmem:[%s6 + $0x38] sm:$0xf]
    %v792 = vld [vmem:[%s6 + $0x3c] sm:$0xf]
    %v793 = vld [vmem:[%s6 + $0x40] sm:$0xf]
    %v794 = vld [vmem:[%s6 + $0x44] sm:$0xf]
    %v795 = vld [vmem:[%s6 + $0x48] sm:$0xf]
    %v796 = vld [vmem:[%s6 + $0x4c] sm:$0xf]
    %v797 = vld [vmem:[%s6 + $0x50] sm:$0xf]
    %v798 = vld [vmem:[%s6 + $0x54] sm:$0xf]
    %v799 = vld [vmem:[%s6 + $0x58] sm:$0xf]
    %v800 = vld [vmem:[%s6 + $0x5c] sm:$0xf]
    %v801 = vld [vmem:[%s6 + $0x60] sm:$0xf]
    %v802 = vld [vmem:[%s6 + $0x64] sm:$0xf]
    %v803 = vld [vmem:[%s6 + $0x68] sm:$0xf]
    %v804 = vld [vmem:[%s6 + $0x6c] sm:$0xf]
    %v805 = vld [vmem:[%s6 + $0x70] sm:$0xf]
    %v806 = vld [vmem:[%s6 + $0x74] sm:$0xf]
    %v807 = vld [vmem:[%s6 + $0x78] sm:$0xf]
    %v808 = vld [vmem:[%s6 + $0x7c] sm:$0xf]
    %v809 = vlaneseq
    %v810 = vshrl.u32 %v809, 7
    %v811 = vsub.s32 2, %v810
    %v812 = vrot.slane %v699, %v811
    %v845 = vunpack.c.l.b16 %v777
    %v846 = vunpack.c.l.b16 %v778
    %v847 = vunpack.c.l.b16 %v779
    %v848 = vunpack.c.l.b16 %v780
    %v849 = vunpack.c.l.b16 %v781
    %v850 = vunpack.c.l.b16 %v782
    %v851 = vunpack.c.l.b16 %v783
    %v852 = vunpack.c.l.b16 %v784
    %v853 = vunpack.c.l.b16 %v785
    %v854 = vunpack.c.l.b16 %v786
    %v855 = vunpack.c.l.b16 %v787
    %v856 = vunpack.c.l.b16 %v788
    %v857 = vunpack.c.l.b16 %v789
    %v858 = vunpack.c.l.b16 %v790
    %v859 = vunpack.c.l.b16 %v791
    %v860 = vunpack.c.l.b16 %v792
    %v861 = vunpack.c.l.b16 %v793
    %v862 = vunpack.c.l.b16 %v794
    %v863 = vunpack.c.l.b16 %v795
    %v864 = vunpack.c.l.b16 %v796
    %v865 = vunpack.c.l.b16 %v797
    %v866 = vunpack.c.l.b16 %v798
    %v867 = vunpack.c.l.b16 %v799
    %v868 = vunpack.c.l.b16 %v800
    %v869 = vunpack.c.l.b16 %v801
    %v870 = vunpack.c.l.b16 %v802
    %v871 = vunpack.c.l.b16 %v803
    %v872 = vunpack.c.l.b16 %v804
    %v873 = vunpack.c.l.b16 %v805
    %v874 = vunpack.c.l.b16 %v806
    %v875 = vunpack.c.l.b16 %v807
    %v876 = vunpack.c.l.b16 %v808
    %v877 = vpack.c.b16 %v846, %v845
    %v878 = vpack.c.b16 %v848, %v847
    %v879 = vpack.c.b16 %v850, %v849
    %v880 = vpack.c.b16 %v852, %v851
    %v881 = vpack.c.b16 %v854, %v853
    %v882 = vpack.c.b16 %v856, %v855
    %v883 = vpack.c.b16 %v858, %v857
    %v884 = vpack.c.b16 %v860, %v859
    %v885 = vpack.c.b16 %v862, %v861
    %v886 = vpack.c.b16 %v864, %v863
    %v887 = vpack.c.b16 %v866, %v865
    %v888 = vpack.c.b16 %v868, %v867
    %v889 = vpack.c.b16 %v870, %v869
    %v890 = vpack.c.b16 %v872, %v871
    %v891 = vpack.c.b16 %v874, %v873
    %v892 = vpack.c.b16 %v876, %v875
    %909 = vmatprep.subr.bf16.mxu0 0
    %910 = vmatpush1.bf16.msra.mxu0 %v877
    %911 = vmatprep.subr.bf16.mxu0 0
    %912 = vmatpush1.bf16.msra.mxu0 %v878
    %913 = vmatprep.subr.bf16.mxu0 0
    %914 = vmatpush1.bf16.msra.mxu0 %v879
    %915 = vmatprep.subr.bf16.mxu0 0
    %916 = vmatpush1.bf16.msra.mxu0 %v880
    %917 = vmatprep.subr.bf16.mxu0 0
    %918 = vmatpush1.bf16.msra.mxu0 %v881
    %919 = vmatprep.subr.bf16.mxu0 0
    %920 = vmatpush1.bf16.msra.mxu0 %v882
    %921 = vmatprep.subr.bf16.mxu0 0
    %922 = vmatpush1.bf16.msra.mxu0 %v883
    %923 = vmatprep.subr.bf16.mxu0 0
    %924 = vmatpush1.bf16.msra.mxu0 %v884
    %925 = vmatprep.subr.bf16.mxu0 0
    %926 = vmatpush1.bf16.msra.mxu0 %v885
    %927 = vmatprep.subr.bf16.mxu0 0
    %928 = vmatpush1.bf16.msra.mxu0 %v886
    %929 = vmatprep.subr.bf16.mxu0 0
    %930 = vmatpush1.bf16.msra.mxu0 %v887
    %931 = vmatprep.subr.bf16.mxu0 0
    %932 = vmatpush1.bf16.msra.mxu0 %v888
    %933 = vmatprep.subr.bf16.mxu0 0
    %934 = vmatpush1.bf16.msra.mxu0 %v889
    %935 = vmatprep.subr.bf16.mxu0 0
    %936 = vmatpush1.bf16.msra.mxu0 %v890
    %937 = vmatprep.subr.bf16.mxu0 0
    %938 = vmatpush1.bf16.msra.mxu0 %v891
    %939 = vmatprep.subr.bf16.mxu0 0
    %940 = vmatpush1.bf16.msra.mxu0 %v892
    %941 = vmatprep.mubr.bf16.mxu0 %v776
    %942 = vmatmul.mubr.bf16.gmra.mrb[0].mxu0 %v775
    %v943 = vpop.f32.mrb[0].mxu0
    %v944 = vadd.f32 %v812, %v943
    %v945 = vpop.f32.mrb[0].mxu0
    %v946 = vpop.f32.mrb[0].mxu0
    %v947 = vpop.f32.mrb[0].mxu0
    %948 = vdwg.mxu0
    %v949 = vld [vmem:[%s7] sm:$0xff]
    %v950 = vrot.slane %v944, 4
    %v951 = vadd.f32 %v944, %v950
    %v952 = vrot.slane %v951, 2
    %v953 = vadd.f32 %v951, %v952
    %v954 = vrot.slane %v953, 1
    %v955 = vadd.f32 %v953, %v954
    %v956 = vmul.f32 %v955, 0.125
    %v957 = vmul.f32 %v944, %v944
    %v958 = vrot.slane %v957, 4
    %v959 = vadd.f32 %v957, %v958
    %v960 = vrot.slane %v959, 2
    %v961 = vadd.f32 %v959, %v960
    %v962 = vrot.slane %v961, 1
    %v963 = vadd.f32 %v961, %v962
    %v964 = vmul.f32 %v963, 0.125
    %v965 = vmul.f32 %v956, %v956
    %v966 = vsub.f32 %v964, %v965
    %v967 = vmax.f32 %v966, 0.0
    %v968 = vadd.f32 %v967, 1e-05
    %v969 = vrsqrt.pop %v968
    %v970 = vmul.f32 %v969, %v949
    %v971 = vmul.f32 %v956, %v970
    %v973 = vrot.slane %v971, 7
    %v975 = vsub.f32 %v949, %v973
    %v976 = vlaneseq
    %v977 = vshrl.u32 %v976, 7
    %v978 = vsub.s32 0, %v977
    %v979 = vrot.slane %v970, %v978
    %v980 = vmul.f32 %v944, %v979
    %v981 = vlaneseq
    %v982 = vshrl.u32 %v981, 7
    %v983 = vsub.s32 1, %v982
    %v984 = vrot.slane %v975, %v983
    %v985 = vadd.f32 %v980, %v984
    %v986 = vmax.f32 %v985, 0.0
    %v987 = vpack.c.bf16 %v986, %v986
    %v988 = vld [vmem:[%s8] sm:$0xf]
    %v989 = vld [vmem:[%s8 + $0x4] sm:$0xf]
    %v990 = vld [vmem:[%s8 + $0x8] sm:$0xf]
    %v991 = vld [vmem:[%s8 + $0xc] sm:$0xf]
    %v992 = vld [vmem:[%s8 + $0x10] sm:$0xf]
    %v993 = vld [vmem:[%s8 + $0x14] sm:$0xf]
    %v994 = vld [vmem:[%s8 + $0x18] sm:$0xf]
    %v995 = vld [vmem:[%s8 + $0x1c] sm:$0xf]
    %v996 = vld [vmem:[%s8 + $0x20] sm:$0xf]
    %v997 = vld [vmem:[%s8 + $0x24] sm:$0xf]
    %v998 = vld [vmem:[%s8 + $0x28] sm:$0xf]
    %v999 = vld [vmem:[%s8 + $0x2c] sm:$0xf]
    %v1000 = vld [vmem:[%s8 + $0x30] sm:$0xf]
    %v1001 = vld [vmem:[%s8 + $0x34] sm:$0xf]
    %v1002 = vld [vmem:[%s8 + $0x38] sm:$0xf]
    %v1003 = vld [vmem:[%s8 + $0x3c] sm:$0xf]
    %v1004 = vlaneseq
    %v1005 = vshrl.u32 %v1004, 7
    %v1006 = vsub.s32 2, %v1005
    %v1007 = vrot.slane %v949, %v1006
    %v1024 = vunpack.c.l.b16 %v988
    %v1025 = vunpack.c.l.b16 %v989
    %v1026 = vunpack.c.l.b16 %v990
    %v1027 = vunpack.c.l.b16 %v991
    %v1028 = vunpack.c.l.b16 %v992
    %v1029 = vunpack.c.l.b16 %v993
    %v1030 = vunpack.c.l.b16 %v994
    %v1031 = vunpack.c.l.b16 %v995
    %v1032 = vunpack.c.l.b16 %v996
    %v1033 = vunpack.c.l.b16 %v997
    %v1034 = vunpack.c.l.b16 %v998
    %v1035 = vunpack.c.l.b16 %v999
    %v1036 = vunpack.c.l.b16 %v1000
    %v1037 = vunpack.c.l.b16 %v1001
    %v1038 = vunpack.c.l.b16 %v1002
    %v1039 = vunpack.c.l.b16 %v1003
    %v1040 = vpack.c.b16 %v1025, %v1024
    %v1041 = vpack.c.b16 %v1027, %v1026
    %v1042 = vpack.c.b16 %v1029, %v1028
    %v1043 = vpack.c.b16 %v1031, %v1030
    %v1044 = vpack.c.b16 %v1033, %v1032
    %v1045 = vpack.c.b16 %v1035, %v1034
    %v1046 = vpack.c.b16 %v1037, %v1036
    %v1047 = vpack.c.b16 %v1039, %v1038
    %1056 = vmatprep.subr.bf16.mxu0 0
    %1057 = vmatpush1.bf16.msra.mxu0 %v1040
    %1058 = vmatprep.subr.bf16.mxu0 0
    %1059 = vmatpush1.bf16.msra.mxu0 %v1041
    %1060 = vmatprep.subr.bf16.mxu0 0
    %1061 = vmatpush1.bf16.msra.mxu0 %v1042
    %1062 = vmatprep.subr.bf16.mxu0 0
    %1063 = vmatpush1.bf16.msra.mxu0 %v1043
    %1064 = vmatprep.subr.bf16.mxu0 0
    %1065 = vmatpush1.bf16.msra.mxu0 %v1044
    %1066 = vmatprep.subr.bf16.mxu0 0
    %1067 = vmatpush1.bf16.msra.mxu0 %v1045
    %1068 = vmatprep.subr.bf16.mxu0 0
    %1069 = vmatpush1.bf16.msra.mxu0 %v1046
    %1070 = vmatprep.subr.bf16.mxu0 0
    %1071 = vmatpush1.bf16.msra.mxu0 %v1047
    %1072 = vmatprep.subr.bf16.mxu0 0
    %1073 = vmatpush1.bf16.msra.mxu0 0
    %1074 = vmatprep.subr.bf16.mxu0 0
    %1075 = vmatpush1.bf16.msra.mxu0 0
    %1076 = vmatprep.subr.bf16.mxu0 0
    %1077 = vmatpush1.bf16.msra.mxu0 0
    %1078 = vmatprep.subr.bf16.mxu0 0
    %1079 = vmatpush1.bf16.msra.mxu0 0
    %1080 = vmatprep.subr.bf16.mxu0 0
    %1081 = vmatpush1.bf16.msra.mxu0 0
    %1082 = vmatprep.subr.bf16.mxu0 0
    %1083 = vmatpush1.bf16.msra.mxu0 0
    %1084 = vmatprep.subr.bf16.mxu0 0
    %1085 = vmatpush1.bf16.msra.mxu0 0
    %1086 = vmatprep.subr.bf16.mxu0 0
    %1087 = vmatpush1.bf16.msra.mxu0 0
    %1088 = vmatprep.mubr.bf16.mxu0 0
    %1089 = vmatmul.mubr.bf16.gmra.mrb[0].mxu0 %v987
    %v1090 = vpop.f32.mrb[0].mxu0
    %v1091 = vadd.f32 %v1007, %v1090
    %v1092 = vpop.f32.mrb[0].mxu0
    %v1093 = vpop.f32.mrb[0].mxu0
    %v1094 = vpop.f32.mrb[0].mxu0
    %1095 = vdwg.mxu0
    %v1096 = vlaneseq
    %v1097 = vand.u32 %v1096, 127
    %vm1098 = vcmp.lt.s32.totalorder %v1097, 2
    %v1099 = vsel %vm1098, %v1091, -inf
    %1100 = vmax.xlane.f32.xlu0 %v1099
    %v1101 = vpop.xlane.xlu0 %1100
    %v1102 = vsub.f32 %v1091, %v1101
    %v1103 = vmul.f32 %v1102, 1.442695
    %v1104 = vpow.pop %v1103
    %v1105 = vsel %vm1098, %v1104, 0.0
    %1106 = vadd.xlane.f32.xlu0 %v1105
    %v1107 = vpop.xlane.xlu0 %1106
    %v1108 = vrcp.pop %v1107
    %v1109 = vmul.f32 %v1105, %v1108
    %1110 = vst [vmem:[%s9] sm:$0xff] %v1109
    // Predicated region
    $region46: #{_fused_forward.1} parent=1 // pred_check
      _
    $region47: #{_fused_forward.1} parent=1 // pred_check_branch
      %1112 = sbr.rel (0) target = $region49
    $region48: #{_fused_forward.1} parent=1 // pred_region
      _
    $region49: #{_fused_forward.1} parent=1 // pred_fallthru
      _
    // Predicated region
    $region50: #{_fused_forward.1} parent=1 // pred_check
      _
    $region51: #{_fused_forward.1} parent=1 // pred_check_branch
      %1114 = sbr.rel (0) target = $region53
    $region52: #{_fused_forward.1} parent=1 // pred_region
      _
    $region53: #{_fused_forward.1} parent=1 // pred_fallthru
      _
    %1115 = vsyncpa [#allocation3], 1
    %1116 = vsyncpa [#allocation5], 1

</llo_original>
